<compile_context>
chip_gen: v7x
topology: tpu7x:2x2x1
jax: 0.10.0
libtpu: 0.0.40
codegen_flags: <defaults>
</compile_context>

<pallas_src>
import functools
from math import sqrt

import jax
import jax.numpy as jnp
from jax.experimental import pallas as pl
from jax.experimental.pallas import tpu as pltpu

KH = KW = 3
PAD = 1  # "same" padding for the 3x3 conv used throughout PGAN
_TAPS = tuple((dh, dw) for dh in (-1, 0, 1) for dw in (-1, 0, 1))  # tap t == kh*3 + kw


def _round_up(x, m):
    return ((x + m - 1) // m) * m


def _equalized_conv_kernel(x_ref, w_ref, b_ref, o_ref, xpad_ref, *,
                           W, S, Cin, Cout, B, P0):
    """One batch tile per grid step.

    x_ref    : (B, Cin, S)        flattened NCHW input tile (S = H*W), VMEM
    w_ref    : (9, Cout, Cin)     per-tap weights, he_val already folded in
    b_ref    : (Cout, 1)          bias column, he_val already folded in
    o_ref    : (B, Cout, S)       output tile (lane-dense, already NCHW order)
    xpad_ref : (Cin, Spad)        scratch: one image, flat-spatial with a zero row halo
                                  (data lives at lane offset P0, P0 >= W+1, 128-aligned)
    """
    dtype = xpad_ref.dtype
    Spad = xpad_ref.shape[-1]
    tail = Spad - (P0 + S)

    # Zero the halo lanes every grid step (a few hundred lanes -> negligible) instead of
    # guarding on program_id==0, so the kernel stays correct when the "parallel" batch
    # axis is sharded across TensorCores (each core has its own scratch instance).
    xpad_ref[:, pl.ds(0, P0)] = jnp.zeros((Cin, P0), dtype)
    xpad_ref[:, pl.ds(P0 + S, tail)] = jnp.zeros((Cin, tail), dtype)

    bias = b_ref[...].astype(jnp.float32)                       # (Cout, 1)

    # Column-edge validity masks; row edges are covered by the zero halo rows.
    col = jax.lax.broadcasted_iota(jnp.int32, (1, S), 1) % W
    not_first_col = col > 0          # reading column w-1 is valid
    not_last_col = col < (W - 1)     # reading column w+1 is valid

    @pl.loop(0, B)
    def _per_image(b):
        # Stage image b into the padded flat scratch (lane-aligned VMEM copy).  This
        # replaces the wrapper-level jnp.pad HBM pass of the previous version.
        xpad_ref[:, pl.ds(P0, S)] = x_ref[b]

        acc = jnp.zeros((Cout, S), jnp.float32)
        for t, (dh, dw) in enumerate(_TAPS):
            # Static-offset slice of the padded flat image: row shifts land in the zero
            # halo, column wrap-around is masked out below.
            tap = xpad_ref[:, pl.ds(P0 + dh * W + dw, S)]        # (Cin, S)
            if dw == -1:
                tap = jnp.where(not_first_col, tap, 0)
            elif dw == 1:
                tap = jnp.where(not_last_col, tap, 0)
            # Accumulating K=Cin matmul; no (9*Cin, S) im2col buffer is materialized.
            acc = acc + jnp.dot(w_ref[t], tap, preferred_element_type=jnp.float32)
        # he_val is already folded into w_ref / b_ref by the wrapper.
        o_ref[b] = (acc + bias).astype(o_ref.dtype)


def _tile_bytes(rows, lanes, itemsize):
    """VMEM footprint of a (rows, lanes) tile: sublanes round to 8, lanes to 128."""
    return _round_up(max(rows, 1), 8) * _round_up(max(lanes, 1), 128) * itemsize


def _vmem_budget():
    """(requested scoped VMEM limit, byte budget the tile picker may spend)."""
    try:
        cap = int(pltpu.get_tpu_info().vmem_capacity_bytes)
    except Exception:  # no TPU info available -> conservative (v7x per-core) default
        cap = 64 << 20
    limit = min(cap // 2, 64 << 20)     # ~64 MiB on v5e/v6e (128 MiB), ~32 MiB on v7x
    return limit, (limit * 3) // 4      # leave headroom for Mosaic-internal scratch


def _pick_batch_tile(N, H, W, Cin, Cout, itemsize, budget, Spad):
    """Largest divisor of N whose (honestly-accounted) VMEM usage fits the budget,
    keeping >= 2 grid steps when possible (pipelining; both v7x TensorCores)."""
    S = H * W
    # Pipelined (double-buffered) blocks that scale with the batch tile:
    per_image = 2 * _tile_bytes(Cin, S, itemsize)            # x input block
    per_image += 2 * _tile_bytes(Cout, S, itemsize)          # output block
    # Grid-invariant / per-step allocations:
    fixed = _tile_bytes(Cin, Spad, itemsize)                 # padded image scratch
    fixed += 2 * KH * KW * _tile_bytes(Cout, Cin, itemsize)  # weight taps (2 buffers)
    fixed += 2 * _tile_bytes(Cout, 1, itemsize)              # bias (2 buffers)
    fixed += _tile_bytes(Cout, S, 4)                         # f32 accumulator
    fixed += _tile_bytes(Cin, S, itemsize)                   # one live shifted tap
    avail = max(budget - fixed, per_image)
    cap = max(1, avail // per_image)
    if N >= 2:
        cap = min(cap, max(1, N // 2))
    cap = min(cap, N)
    for b in range(int(cap), 0, -1):
        if N % b == 0:
            return b
    return 1


def equalized_conv2d(x_nchw, weight_oihw, bias, *, equalize=True, batch_tile=None):
    """EqualizedLayer(Conv2d(Cin, Cout, 3, padding=1)).forward — NCHW in, NCHW out."""
    N, Cin, H, W = x_nchw.shape
    Cout = weight_oihw.shape[0]
    S = H * W
    fan_in = Cin * KH * KW
    scale = sqrt(2.0 / fan_in) if equalize else 1.0

    # Fold the runtime He scale into the (tiny) weight/bias tensors; this is a one-time
    # op on small tensors, not the "pre-scale activations" anti-pattern.
    w_taps = (jnp.transpose(weight_oihw, (2, 3, 0, 1)).reshape(KH * KW, Cout, Cin)
              * jnp.asarray(scale, weight_oihw.dtype))
    b_col = (bias * jnp.asarray(scale, bias.dtype)).reshape(Cout, 1)

    # Metadata-only reshapes; no jnp.pad / transpose HBM passes anywhere.
    x_flat = x_nchw.reshape(N, Cin, S)

    # Padded flat-spatial scratch geometry: data starts at a 128-aligned offset P0 >= W+1
    # so every tap's read window [P0 + dh*W + dw, +S) stays inside the scratch and all
    # out-of-image rows land on zero lanes.
    P0 = _round_up(W + 1, 128)
    Spad = _round_up(P0 + S + W + 1, 128)

    itemsize = jnp.dtype(x_nchw.dtype).itemsize
    vmem_limit, budget = _vmem_budget()
    if batch_tile is None:
        batch_tile = _pick_batch_tile(N, H, W, Cin, Cout, itemsize, budget, Spad)
    assert N % batch_tile == 0, "batch_tile must divide N"
    grid = (N // batch_tile,)

    # TODO(synk): add spatial (H) tiling with a 1-row halo so very large single-image
    # resolutions (late PGAN stages) fit v7x's 64 MiB VMEM and feed both its TensorCores.
    # TODO(synk): single-buffer the grid-invariant weight/bias blocks
    # (pipeline_mode=pl.Buffered(1)) to reclaim one weight copy of VMEM at large Cin*Cout.
    # TODO(synk): for the tiny 4x4/8x8 stages (S < 128 lanes) a C-major input layout would
    # allow folding the batch into the lane dim and avoid masked output stores.

    kernel = functools.partial(_equalized_conv_kernel, W=W, S=S, Cin=Cin, Cout=Cout,
                               B=batch_tile, P0=P0)

    out_flat = pl.pallas_call(
        kernel,
        out_shape=jax.ShapeDtypeStruct((N, Cout, S), x_nchw.dtype),
        grid=grid,
        in_specs=[
            pl.BlockSpec((batch_tile, Cin, S), lambda n: (n, 0, 0)),
            # Weight / bias blocks are grid-invariant (constant index_map): DMA'd once
            # and re-used across every grid step.
            pl.BlockSpec((KH * KW, Cout, Cin), lambda n: (0, 0, 0)),
            pl.BlockSpec((Cout, 1), lambda n: (0, 0)),
        ],
        out_specs=pl.BlockSpec((batch_tile, Cout, S), lambda n: (n, 0, 0)),
        scratch_shapes=[pltpu.VMEM((Cin, Spad), x_nchw.dtype)],
        compiler_params=pltpu.CompilerParams(
            dimension_semantics=("parallel",),
            vmem_limit_bytes=int(vmem_limit),
        ),
    )(x_flat, w_taps, b_col)

    # (N, Cout, H*W) -> (N, Cout, H, W): contiguous reshape, no HBM transpose pass.
    return out_flat.reshape(N, Cout, H, W)


def _reference(x_nchw, weight_oihw, bias, *, equalize=True):
    """Pure-JAX reference mirroring PyTorch Conv2d + EqualizedLayer scaling."""
    Cin = x_nchw.shape[1]
    he_val = sqrt(2.0 / (Cin * KH * KW))
    y = jax.lax.conv_general_dilated(
        x_nchw.astype(jnp.float32),
        weight_oihw.astype(jnp.float32),
        window_strides=(1, 1),
        padding=((PAD, PAD), (PAD, PAD)),
        dimension_numbers=("NCHW", "OIHW", "NCHW"),
    )
    y = y + bias.astype(jnp.float32)[None, :, None, None]
    if equalize:
        y = y * he_val
    return y.astype(x_nchw.dtype)


if __name__ == "__main__":
    key = jax.random.PRNGKey(0)
    kx, kw = jax.random.split(key)

    N, Cin, H, W = 2, 4, 16, 16
    Cout = 8
    lrmult = 1.0

    # EqualizedLayer.__init__ semantics: weight ~ N(0, 1) / lrmult, bias = 0.
    x = jax.random.normal(kx, (N, Cin, H, W), dtype=jnp.float32)
    weight = jax.random.normal(kw, (Cout, Cin, KH, KW), dtype=jnp.float32) / lrmult
    bias = jnp.zeros((Cout,), dtype=jnp.float32)

    out = equalized_conv2d(x, weight, bias, equalize=True)
    out = jax.block_until_ready(out)

    ref = _reference(x, weight, bias, equalize=True)
    assert out.shape == (N, Cout, H, W)
    assert jnp.allclose(out, ref, atol=2e-4, rtol=2e-4), "mismatch vs reference conv"

    print("KERNEL_OK")
</pallas_src>

<mosaic_0001>
module attributes {stable_mosaic.version = 11 : i64} {
  func.func @_equalized_conv_kernel(%arg0: i32, %arg1: memref<1x4x256xf32, #tpu.memory_space<vmem>>, %arg2: memref<9x8x4xf32, #tpu.memory_space<vmem>>, %arg3: memref<8x1xf32, #tpu.memory_space<vmem>>, %arg4: memref<1x8x256xf32, #tpu.memory_space<vmem>>, %arg5: memref<4x512xf32, #tpu.memory_space<vmem>>) attributes {dimension_semantics = [#tpu.dimension_semantics<parallel>], iteration_bounds = array<i64: 2>, scalar_prefetch = 0 : i64, scratch_operands = 1 : i64, tpu.core_type = #tpu.core_type<tc>, window_params = [{transform_indices = @transform_0, window_bounds = array<i64: 1, 4, 256>}, {pipeline_mode = #tpu.pipeline_mode<synchronous>, transform_indices = @transform_1, window_bounds = array<i64: 9, 8, 4>}, {pipeline_mode = #tpu.pipeline_mode<synchronous>, transform_indices = @transform_2, window_bounds = array<i64: 8, 1>}, {transform_indices = @transform_3, window_bounds = array<i64: 1, 8, 256>}]} {
    %cst = arith.constant 0.000000e+00 : f32
    %0 = vector.broadcast %cst : f32 to vector<4x128xf32>
    %c0 = arith.constant 0 : index
    %c0_0 = arith.constant 0 : index
    %1 = vector.load %arg5[%c0, %c0_0] : memref<4x512xf32, #tpu.memory_space<vmem>>, vector<4x128xf32>
    tpu.vector_store %arg5[%c0, %c0_0], %0 {strides = array<i32>} : memref<4x512xf32, #tpu.memory_space<vmem>>, vector<4x128xf32>,
    %cst_1 = arith.constant 0.000000e+00 : f32
    %2 = vector.broadcast %cst_1 : f32 to vector<4x128xf32>
    %c0_2 = arith.constant 0 : index
    %c384 = arith.constant 384 : index
    %3 = vector.load %arg5[%c0_2, %c384] : memref<4x512xf32, #tpu.memory_space<vmem>>, vector<4x128xf32>
    tpu.vector_store %arg5[%c0_2, %c384], %2 {strides = array<i32>} : memref<4x512xf32, #tpu.memory_space<vmem>>, vector<4x128xf32>,
    %c0_3 = arith.constant 0 : index
    %c0_4 = arith.constant 0 : index
    %4 = vector.load %arg3[%c0_3, %c0_4] : memref<8x1xf32, #tpu.memory_space<vmem>>, vector<8x1xf32>
    %5 = tpu.iota {dimensions = array<i32: 1>} : vector<1x256xi32>
    %c16_i32 = arith.constant 16 : i32
    %c0_i32 = arith.constant 0 : i32
    %6 = arith.cmpi eq, %c16_i32, %c0_i32 : i32
    %c1_i32 = arith.constant 1 : i32
    %7 = arith.select %6, %c1_i32, %c16_i32 : i32
    %8 = vector.broadcast %7 : i32 to vector<1x256xi32>
    %9 = arith.remsi %5, %8 : vector<1x256xi32>
    %c0_i32_5 = arith.constant 0 : i32
    %10 = vector.broadcast %c0_i32_5 : i32 to vector<1x256xi32>
    %11 = arith.cmpi ne, %9, %10 : vector<1x256xi32>
    %c0_i32_6 = arith.constant 0 : i32
    %12 = vector.broadcast %c0_i32_6 : i32 to vector<1x256xi32>
    %13 = arith.cmpi slt, %9, %12 : vector<1x256xi32>
    %c0_i32_7 = arith.constant 0 : i32
    %14 = arith.cmpi slt, %7, %c0_i32_7 : i32
    %15 = vector.broadcast %14 : i1 to vector<1x256xi1>
    %16 = vector.broadcast %15 : vector<1x256xi1> to vector<1x256xi1>
    %17 = arith.xori %13, %16 : vector<1x256xi1>
    %18 = arith.andi %17, %11 : vector<1x256xi1>
    %19 = vector.broadcast %7 : i32 to vector<1x256xi32>
    %20 = arith.addi %9, %19 : vector<1x256xi32>
    %21 = arith.select %18, %20, %9 : vector<1x256xi1>, vector<1x256xi32>
    %c0_i32_8 = arith.constant 0 : i32
    %22 = vector.broadcast %c0_i32_8 : i32 to vector<1x256xi32>
    %23 = arith.cmpi sgt, %21, %22 : vector<1x256xi32>
    %c15_i32 = arith.constant 15 : i32
    %24 = vector.broadcast %c15_i32 : i32 to vector<1x256xi32>
    %25 = arith.cmpi slt, %21, %24 : vector<1x256xi32>
    %c0_i32_9 = arith.constant 0 : i32
    %c1_i32_10 = arith.constant 1 : i32
    %26 = arith.muli %c0_i32_9, %c1_i32_10 : i32
    %c0_i32_11 = arith.constant 0 : i32
    %27 = arith.addi %c0_i32_11, %26 : i32
    %28 = arith.index_cast %27 : i32 to index
    %c0_12 = arith.constant 0 : index
    %c0_13 = arith.constant 0 : index
    %29 = vector.load %arg1[%28, %c0_12, %c0_13] : memref<1x4x256xf32, #tpu.memory_space<vmem>>, vector<1x4x256xf32>
    %30 = vector.shape_cast %29 : vector<1x4x256xf32> to vector<4x256xf32>
    %c0_14 = arith.constant 0 : index
    %c128 = arith.constant 128 : index
    %31 = vector.load %arg5[%c0_14, %c128] : memref<4x512xf32, #tpu.memory_space<vmem>>, vector<4x256xf32>
    tpu.vector_store %arg5[%c0_14, %c128], %30 {strides = array<i32>} : memref<4x512xf32, #tpu.memory_space<vmem>>, vector<4x256xf32>,
    %cst_15 = arith.constant 0.000000e+00 : f32
    %32 = vector.broadcast %cst_15 : f32 to vector<8x256xf32>
    %c0_16 = arith.constant 0 : index
    %c111 = arith.constant 111 : index
    %33 = vector.load %arg5[%c0_16, %c111] : memref<4x512xf32, #tpu.memory_space<vmem>>, vector<4x256xf32>
    %c0_i32_17 = arith.constant 0 : i32
    %34 = arith.sitofp %c0_i32_17 : i32 to f32
    %35 = vector.shape_cast %23 : vector<1x256xi1> to vector<1x256xi1>
    %36 = vector.broadcast %35 : vector<1x256xi1> to vector<4x256xi1>
    %37 = vector.broadcast %34 : f32 to vector<4x256xf32>
    %38 = arith.select %36, %33, %37 : vector<4x256xi1>, vector<4x256xf32>
    %c0_18 = arith.constant 0 : index
    %c0_19 = arith.constant 0 : index
    %c0_20 = arith.constant 0 : index
    %39 = vector.load %arg2[%c0_18, %c0_19, %c0_20] : memref<9x8x4xf32, #tpu.memory_space<vmem>>, vector<1x8x4xf32>
    %40 = vector.shape_cast %39 : vector<1x8x4xf32> to vector<8x4xf32>
    %cst_21 = arith.constant dense<0.000000e+00> : vector<8x256xf32>
    %41 = tpu.matmul %40, %38, %cst_21 {dimension_numbers = #tpu.dot_dimension_numbers<[1], [0], [0], [1], [0, 0, 1, 1], [], []>} : vector<8x4xf32>, vector<4x256xf32>, vector<8x256xf32> -> vector<8x256xf32>
    %42 = arith.addf %32, %41 : vector<8x256xf32>
    %c0_22 = arith.constant 0 : index
    %c112 = arith.constant 112 : index
    %43 = vector.load %arg5[%c0_22, %c112] : memref<4x512xf32, #tpu.memory_space<vmem>>, vector<4x256xf32>
    %c1 = arith.constant 1 : index
    %c0_23 = arith.constant 0 : index
    %c0_24 = arith.constant 0 : index
    %44 = vector.load %arg2[%c1, %c0_23, %c0_24] : memref<9x8x4xf32, #tpu.memory_space<vmem>>, vector<1x8x4xf32>
    %45 = vector.shape_cast %44 : vector<1x8x4xf32> to vector<8x4xf32>
    %cst_25 = arith.constant dense<0.000000e+00> : vector<8x256xf32>
    %46 = tpu.matmul %45, %43, %cst_25 {dimension_numbers = #tpu.dot_dimension_numbers<[1], [0], [0], [1], [0, 0, 1, 1], [], []>} : vector<8x4xf32>, vector<4x256xf32>, vector<8x256xf32> -> vector<8x256xf32>
    %47 = arith.addf %42, %46 : vector<8x256xf32>
    %c0_26 = arith.constant 0 : index
    %c113 = arith.constant 113 : index
    %48 = vector.load %arg5[%c0_26, %c113] : memref<4x512xf32, #tpu.memory_space<vmem>>, vector<4x256xf32>
    %c0_i32_27 = arith.constant 0 : i32
    %49 = arith.sitofp %c0_i32_27 : i32 to f32
    %50 = vector.shape_cast %25 : vector<1x256xi1> to vector<1x256xi1>
    %51 = vector.broadcast %50 : vector<1x256xi1> to vector<4x256xi1>
    %52 = vector.broadcast %49 : f32 to vector<4x256xf32>
    %53 = arith.select %51, %48, %52 : vector<4x256xi1>, vector<4x256xf32>
    %c2 = arith.constant 2 : index
    %c0_28 = arith.constant 0 : index
    %c0_29 = arith.constant 0 : index
    %54 = vector.load %arg2[%c2, %c0_28, %c0_29] : memref<9x8x4xf32, #tpu.memory_space<vmem>>, vector<1x8x4xf32>
    %55 = vector.shape_cast %54 : vector<1x8x4xf32> to vector<8x4xf32>
    %cst_30 = arith.constant dense<0.000000e+00> : vector<8x256xf32>
    %56 = tpu.matmul %55, %53, %cst_30 {dimension_numbers = #tpu.dot_dimension_numbers<[1], [0], [0], [1], [0, 0, 1, 1], [], []>} : vector<8x4xf32>, vector<4x256xf32>, vector<8x256xf32> -> vector<8x256xf32>
    %57 = arith.addf %47, %56 : vector<8x256xf32>
    %c0_31 = arith.constant 0 : index
    %c127 = arith.constant 127 : index
    %58 = vector.load %arg5[%c0_31, %c127] : memref<4x512xf32, #tpu.memory_space<vmem>>, vector<4x256xf32>
    %c0_i32_32 = arith.constant 0 : i32
    %59 = arith.sitofp %c0_i32_32 : i32 to f32
    %60 = vector.shape_cast %23 : vector<1x256xi1> to vector<1x256xi1>
    %61 = vector.broadcast %60 : vector<1x256xi1> to vector<4x256xi1>
    %62 = vector.broadcast %59 : f32 to vector<4x256xf32>
    %63 = arith.select %61, %58, %62 : vector<4x256xi1>, vector<4x256xf32>
    %c3 = arith.constant 3 : index
    %c0_33 = arith.constant 0 : index
    %c0_34 = arith.constant 0 : index
    %64 = vector.load %arg2[%c3, %c0_33, %c0_34] : memref<9x8x4xf32, #tpu.memory_space<vmem>>, vector<1x8x4xf32>
    %65 = vector.shape_cast %64 : vector<1x8x4xf32> to vector<8x4xf32>
    %cst_35 = arith.constant dense<0.000000e+00> : vector<8x256xf32>
    %66 = tpu.matmul %65, %63, %cst_35 {dimension_numbers = #tpu.dot_dimension_numbers<[1], [0], [0], [1], [0, 0, 1, 1], [], []>} : vector<8x4xf32>, vector<4x256xf32>, vector<8x256xf32> -> vector<8x256xf32>
    %67 = arith.addf %57, %66 : vector<8x256xf32>
    %c0_36 = arith.constant 0 : index
    %c128_37 = arith.constant 128 : index
    %68 = vector.load %arg5[%c0_36, %c128_37] : memref<4x512xf32, #tpu.memory_space<vmem>>, vector<4x256xf32>
    %c4 = arith.constant 4 : index
    %c0_38 = arith.constant 0 : index
    %c0_39 = arith.constant 0 : index
    %69 = vector.load %arg2[%c4, %c0_38, %c0_39] : memref<9x8x4xf32, #tpu.memory_space<vmem>>, vector<1x8x4xf32>
    %70 = vector.shape_cast %69 : vector<1x8x4xf32> to vector<8x4xf32>
    %cst_40 = arith.constant dense<0.000000e+00> : vector<8x256xf32>
    %71 = tpu.matmul %70, %68, %cst_40 {dimension_numbers = #tpu.dot_dimension_numbers<[1], [0], [0], [1], [0, 0, 1, 1], [], []>} : vector<8x4xf32>, vector<4x256xf32>, vector<8x256xf32> -> vector<8x256xf32>
    %72 = arith.addf %67, %71 : vector<8x256xf32>
    %c0_41 = arith.constant 0 : index
    %c129 = arith.constant 129 : index
    %73 = vector.load %arg5[%c0_41, %c129] : memref<4x512xf32, #tpu.memory_space<vmem>>, vector<4x256xf32>
    %c0_i32_42 = arith.constant 0 : i32
    %74 = arith.sitofp %c0_i32_42 : i32 to f32
    %75 = vector.shape_cast %25 : vector<1x256xi1> to vector<1x256xi1>
    %76 = vector.broadcast %75 : vector<1x256xi1> to vector<4x256xi1>
    %77 = vector.broadcast %74 : f32 to vector<4x256xf32>
    %78 = arith.select %76, %73, %77 : vector<4x256xi1>, vector<4x256xf32>
    %c5 = arith.constant 5 : index
    %c0_43 = arith.constant 0 : index
    %c0_44 = arith.constant 0 : index
    %79 = vector.load %arg2[%c5, %c0_43, %c0_44] : memref<9x8x4xf32, #tpu.memory_space<vmem>>, vector<1x8x4xf32>
    %80 = vector.shape_cast %79 : vector<1x8x4xf32> to vector<8x4xf32>
    %cst_45 = arith.constant dense<0.000000e+00> : vector<8x256xf32>
    %81 = tpu.matmul %80, %78, %cst_45 {dimension_numbers = #tpu.dot_dimension_numbers<[1], [0], [0], [1], [0, 0, 1, 1], [], []>} : vector<8x4xf32>, vector<4x256xf32>, vector<8x256xf32> -> vector<8x256xf32>
    %82 = arith.addf %72, %81 : vector<8x256xf32>
    %c0_46 = arith.constant 0 : index
    %c143 = arith.constant 143 : index
    %83 = vector.load %arg5[%c0_46, %c143] : memref<4x512xf32, #tpu.memory_space<vmem>>, vector<4x256xf32>
    %c0_i32_47 = arith.constant 0 : i32
    %84 = arith.sitofp %c0_i32_47 : i32 to f32
    %85 = vector.shape_cast %23 : vector<1x256xi1> to vector<1x256xi1>
    %86 = vector.broadcast %85 : vector<1x256xi1> to vector<4x256xi1>
    %87 = vector.broadcast %84 : f32 to vector<4x256xf32>
    %88 = arith.select %86, %83, %87 : vector<4x256xi1>, vector<4x256xf32>
    %c6 = arith.constant 6 : index
    %c0_48 = arith.constant 0 : index
    %c0_49 = arith.constant 0 : index
    %89 = vector.load %arg2[%c6, %c0_48, %c0_49] : memref<9x8x4xf32, #tpu.memory_space<vmem>>, vector<1x8x4xf32>
    %90 = vector.shape_cast %89 : vector<1x8x4xf32> to vector<8x4xf32>
    %cst_50 = arith.constant dense<0.000000e+00> : vector<8x256xf32>
    %91 = tpu.matmul %90, %88, %cst_50 {dimension_numbers = #tpu.dot_dimension_numbers<[1], [0], [0], [1], [0, 0, 1, 1], [], []>} : vector<8x4xf32>, vector<4x256xf32>, vector<8x256xf32> -> vector<8x256xf32>
    %92 = arith.addf %82, %91 : vector<8x256xf32>
    %c0_51 = arith.constant 0 : index
    %c144 = arith.constant 144 : index
    %93 = vector.load %arg5[%c0_51, %c144] : memref<4x512xf32, #tpu.memory_space<vmem>>, vector<4x256xf32>
    %c7 = arith.constant 7 : index
    %c0_52 = arith.constant 0 : index
    %c0_53 = arith.constant 0 : index
    %94 = vector.load %arg2[%c7, %c0_52, %c0_53] : memref<9x8x4xf32, #tpu.memory_space<vmem>>, vector<1x8x4xf32>
    %95 = vector.shape_cast %94 : vector<1x8x4xf32> to vector<8x4xf32>
    %cst_54 = arith.constant dense<0.000000e+00> : vector<8x256xf32>
    %96 = tpu.matmul %95, %93, %cst_54 {dimension_numbers = #tpu.dot_dimension_numbers<[1], [0], [0], [1], [0, 0, 1, 1], [], []>} : vector<8x4xf32>, vector<4x256xf32>, vector<8x256xf32> -> vector<8x256xf32>
    %97 = arith.addf %92, %96 : vector<8x256xf32>
    %c0_55 = arith.constant 0 : index
    %c145 = arith.constant 145 : index
    %98 = vector.load %arg5[%c0_55, %c145] : memref<4x512xf32, #tpu.memory_space<vmem>>, vector<4x256xf32>
    %c0_i32_56 = arith.constant 0 : i32
    %99 = arith.sitofp %c0_i32_56 : i32 to f32
    %100 = vector.shape_cast %25 : vector<1x256xi1> to vector<1x256xi1>
    %101 = vector.broadcast %100 : vector<1x256xi1> to vector<4x256xi1>
    %102 = vector.broadcast %99 : f32 to vector<4x256xf32>
    %103 = arith.select %101, %98, %102 : vector<4x256xi1>, vector<4x256xf32>
    %c8 = arith.constant 8 : index
    %c0_57 = arith.constant 0 : index
    %c0_58 = arith.constant 0 : index
    %104 = vector.load %arg2[%c8, %c0_57, %c0_58] : memref<9x8x4xf32, #tpu.memory_space<vmem>>, vector<1x8x4xf32>
    %105 = vector.shape_cast %104 : vector<1x8x4xf32> to vector<8x4xf32>
    %cst_59 = arith.constant dense<0.000000e+00> : vector<8x256xf32>
    %106 = tpu.matmul %105, %103, %cst_59 {dimension_numbers = #tpu.dot_dimension_numbers<[1], [0], [0], [1], [0, 0, 1, 1], [], []>} : vector<8x4xf32>, vector<4x256xf32>, vector<8x256xf32> -> vector<8x256xf32>
    %107 = arith.addf %97, %106 : vector<8x256xf32>
    %108 = vector.broadcast %4 : vector<8x1xf32> to vector<8x256xf32>
    %109 = arith.addf %107, %108 : vector<8x256xf32>
    %110 = arith.index_cast %27 : i32 to index
    %c0_60 = arith.constant 0 : index
    %c0_61 = arith.constant 0 : index
    %111 = vector.load %arg4[%110, %c0_60, %c0_61] : memref<1x8x256xf32, #tpu.memory_space<vmem>>, vector<1x8x256xf32>
    %112 = vector.shape_cast %111 : vector<1x8x256xf32> to vector<8x256xf32>
    %113 = vector.shape_cast %109 : vector<8x256xf32> to vector<1x8x256xf32>
    tpu.vector_store %arg4[%110, %c0_60, %c0_61], %113 {strides = array<i32>} : memref<1x8x256xf32, #tpu.memory_space<vmem>>, vector<1x8x256xf32>,
    %c1_i32_62 = arith.constant 1 : i32
    return
  }
  func.func @transform_0(%arg0: i32) -> (i32, i32, i32) {
    %c0_i32 = arith.constant 0 : i32
    %c0_i32_0 = arith.constant 0 : i32
    %c0_i32_1 = arith.constant 0 : i32
    return %arg0, %c0_i32, %c0_i32_0 : i32, i32, i32
  }
  func.func @transform_1(%arg0: i32) -> (i32, i32, i32) {
    %c0_i32 = arith.constant 0 : i32
    %c0_i32_0 = arith.constant 0 : i32
    %c0_i32_1 = arith.constant 0 : i32
    %c0_i32_2 = arith.constant 0 : i32
    return %c0_i32, %c0_i32_0, %c0_i32_1 : i32, i32, i32
  }
  func.func @transform_2(%arg0: i32) -> (i32, i32) {
    %c0_i32 = arith.constant 0 : i32
    %c0_i32_0 = arith.constant 0 : i32
    %c0_i32_1 = arith.constant 0 : i32
    return %c0_i32, %c0_i32_0 : i32, i32
  }
  func.func @transform_3(%arg0: i32) -> (i32, i32, i32) {
    %c0_i32 = arith.constant 0 : i32
    %c0_i32_0 = arith.constant 0 : i32
    %c0_i32_1 = arith.constant 0 : i32
    return %arg0, %c0_i32, %c0_i32_0 : i32, i32, i32
  }
}

</mosaic_0001>

<llo_original>
// kernel: tpu_custom_call.1
$region0: #{tpu_custom_call.1}
  #allocation0 [shape = 'u32[]', space=smem, size = 0x4, offset = 0x4, fixed_abs, tag = 'smem constant byte address 0x4 - core index']
  #allocation1 [shape = 'u32[144,128]{1,0:T(1,128)}', space=vmem, size = 0x12000, scoped, tag = 'internal scratch']
  #allocation2 [shape = 'f32[4,512]{1,0:T(4,128)}', space=vmem, size = 0x2000, scoped, tag = 'scratch operand']
  %s0 = inlined_call_operand.vmem [shape: f32[2,4,256], index: 0, kind: input, shape index: {}]
  %s1 = inlined_call_operand.vmem [shape: f32[9,8,4], index: 1, kind: input, shape index: {}]
  %s2 = inlined_call_operand.vmem [shape: f32[8,1], index: 2, kind: input, shape index: {}]
  %s3 = inlined_call_operand.hbm [shape: f32[2,8,256], index: 3, kind: output, shape index: {}]
  %s4 = sld [smem:[#allocation0]]
  $region45: #{tpu_custom_call.1} parent=0
    _
  %s6 = ssub.s32 1, %s4
  %s7 = scalar_select 0, %s6, %s4
  $region1: #{tpu_custom_call.1} parent=0
    #allocation3 [shape = 'u8[16384]{0}', space=vmem, size = 0x4000, scoped, tag = 'output window, operand 0']
    #allocation4 [shape = 's32[2]{0}', space=sflag, size = 0x8, scoped, tag = 'scoped memory for tpu_custom_call.1']
    %8 = vsyncpa [#allocation4], 0
    %s9 = scalar_lea.sflag [#allocation4], 1
    %10 = vsyncpa %s9, 0
    loop: start=0, step=1, limit=4
    $region2: #{tpu_custom_call.1} parent=1 // loop_pre_header
      _
    $region3: #{tpu_custom_call.1} parent=1 // loop_header
      %s12 = sphi 0, %s16
      %p13 = scmp.ge.s32.totalorder %s12, 4
      %s22 = sphi 0, %s24
      %s25 = sphi 0, %s22
      %s26 = sphi 0, %s25
      %s42 = sphi 0, %s26
      %s46 = sphi 0, %s46
      %s48 = sphi 0, %s46
      %s49 = sphi 0, %s48
      %s63 = sphi 0, %s49
      %s67 = sphi 0, %s67
      %s69 = sphi 0, %s67
      %s70 = sphi 0, %s69
      %s84 = sphi 0, %s70
      %s90 = sphi 0, %s92
      %s93 = sphi 0, %s90
      %s94 = sphi 0, %s93
      %s110 = sphi 0, %s94
    $region4: #{tpu_custom_call.1} parent=1 // loop_header_branch
      %15 = sbr.rel (%p13) target = $region8
    $region5: #{tpu_custom_call.1} parent=1 // loop_body
      %s17 = ssub.s32 %s12, 1
      %s18 = ssub.s32 %s12, 2
      %s19 = sadd.s32 %s12, 1
      %s20 = ssub.s32 %s12, %s19
      %p21 = scmp.eq.s32.totalorder %s20, 0
      %s23 = sadd.s32 %s22, 1
      %s24 = scalar_select %p21, %s22, %s23
      %p27 = pneg %p21
      %p28 = scmp.eq.s32.totalorder %s12, 1
      %p29 = por %p27, %p28
      %p30 = scmp.ne.s32.totalorder %s22, %s25
      %p31 = scmp.eq.s32.totalorder %s12, 0
      %p32 = por %p30, %p31
      %p33 = scmp.ne.s32.totalorder %s22, %s25
      %p34 = scmp.eq.s32.totalorder %s17, 1
      %p35 = por %p33, %p34
      %p36 = scmp.ne.s32.totalorder %s25, %s26
      %p37 = scmp.eq.s32.totalorder %s17, 0
      %p38 = por %p36, %p37
      %p39 = scmp.ne.s32.totalorder %s25, %s26
      %p40 = scmp.eq.s32.totalorder %s18, 1
      %p41 = por %p39, %p40
      %p43 = scmp.ne.s32.totalorder %s26, %s42
      %p44 = scmp.eq.s32.totalorder %s18, 0
      %p45 = por %p43, %p44
      %s47 = sadd.s32 %s46, 1
      %p50 = scmp.eq.s32.totalorder %s12, 1
      %p51 = scmp.ne.s32.totalorder %s46, %s48
      %p52 = scmp.eq.s32.totalorder %s12, 0
      %p53 = por %p51, %p52
      %p54 = scmp.ne.s32.totalorder %s46, %s48
      %p55 = scmp.eq.s32.totalorder %s17, 1
      %p56 = por %p54, %p55
      %p57 = scmp.ne.s32.totalorder %s48, %s49
      %p58 = scmp.eq.s32.totalorder %s17, 0
      %p59 = por %p57, %p58
      %p60 = scmp.ne.s32.totalorder %s48, %s49
      %p61 = scmp.eq.s32.totalorder %s18, 1
      %p62 = por %p60, %p61
      %p64 = scmp.ne.s32.totalorder %s49, %s63
      %p65 = scmp.eq.s32.totalorder %s18, 0
      %p66 = por %p64, %p65
      %s68 = sadd.s32 %s67, 1
      %p71 = scmp.eq.s32.totalorder %s12, 1
      %p72 = scmp.ne.s32.totalorder %s67, %s69
      %p73 = scmp.eq.s32.totalorder %s12, 0
      %p74 = por %p72, %p73
      %p75 = scmp.ne.s32.totalorder %s67, %s69
      %p76 = scmp.eq.s32.totalorder %s17, 1
      %p77 = por %p75, %p76
      %p78 = scmp.ne.s32.totalorder %s69, %s70
      %p79 = scmp.eq.s32.totalorder %s17, 0
      %p80 = por %p78, %p79
      %p81 = scmp.ne.s32.totalorder %s69, %s70
      %p82 = scmp.eq.s32.totalorder %s18, 1
      %p83 = por %p81, %p82
      %p85 = scmp.ne.s32.totalorder %s70, %s84
      %p86 = scmp.eq.s32.totalorder %s18, 0
      %p87 = por %p85, %p86
      %s88 = ssub.s32 %s12, %s19
      %p89 = scmp.eq.s32.totalorder %s88, 0
      %s91 = sadd.s32 %s90, 1
      %s92 = scalar_select %p89, %s90, %s91
      %p95 = pneg %p89
      %p96 = scmp.eq.s32.totalorder %s12, 1
      %p97 = por %p95, %p96
      %p98 = scmp.ne.s32.totalorder %s90, %s93
      %p99 = scmp.eq.s32.totalorder %s12, 0
      %p100 = por %p98, %p99
      %p101 = scmp.ne.s32.totalorder %s90, %s93
      %p102 = scmp.eq.s32.totalorder %s17, 1
      %p103 = por %p101, %p102
      %p104 = scmp.ne.s32.totalorder %s93, %s94
      %p105 = scmp.eq.s32.totalorder %s17, 0
      %p106 = por %p104, %p105
      %p107 = scmp.ne.s32.totalorder %s93, %s94
      %p108 = scmp.eq.s32.totalorder %s18, 1
      %p109 = por %p107, %p108
      %p111 = scmp.ne.s32.totalorder %s94, %s110
      %p112 = scmp.eq.s32.totalorder %s18, 0
      %p113 = por %p111, %p112
      %p114 = scmp.le.s32.totalorder 1, %s12
      %p115 = scmp.lt.s32.totalorder %s12, 3
      %p116 = pnand %p114, %p115
      %p117 = pneg %p116
      // Predicated region
      $region9: #{tpu_custom_call.1} parent=5 // pred_check
        _
      $region10: #{tpu_custom_call.1} parent=5 // pred_check_branch
        %119 = sbr.rel (%p116) target = $region12
      $region11: #{tpu_custom_call.1} parent=5 // pred_region
        %s120 = ssub.s32 %s12, 1
        // Predicated region
        $region13: #{tpu_custom_call.1} parent=11 // pred_check
          %p121 = pneg %p59
        $region14: #{tpu_custom_call.1} parent=11 // pred_check_branch
          %123 = sbr.rel (%p121) target = $region16
        $region15: #{tpu_custom_call.1} parent=11 // pred_region
          _
        $region16: #{tpu_custom_call.1} parent=11 // pred_fallthru
          _
        // Predicated region
        $region17: #{tpu_custom_call.1} parent=11 // pred_check
          %p124 = pneg %p80
        $region18: #{tpu_custom_call.1} parent=11 // pred_check_branch
          %126 = sbr.rel (%p124) target = $region20
        $region19: #{tpu_custom_call.1} parent=11 // pred_region
          _
        $region20: #{tpu_custom_call.1} parent=11 // pred_fallthru
          _
      $region12: #{tpu_custom_call.1} parent=5 // pred_fallthru
        _
      %p127 = scmp.lt.s32.totalorder %s12, 2
      // Predicated region
      $region21: #{tpu_custom_call.1} parent=5 // pred_check
        %p128 = pneg %p127
      $region22: #{tpu_custom_call.1} parent=5 // pred_check_branch
        %130 = sbr.rel (%p128) target = $region24
      $region23: #{tpu_custom_call.1} parent=5 // pred_region
        // Predicated region
        $region25: #{tpu_custom_call.1} parent=23 // pred_check
          %p131 = pneg %p32
        $region26: #{tpu_custom_call.1} parent=23 // pred_check_branch
          %133 = sbr.rel (%p131) target = $region28
        $region27: #{tpu_custom_call.1} parent=23 // pred_region
          %p134 = scmp.lt.s32.totalorder %s12, 1
          %s135 = scalar_select %p134, %s12, 1
          %s136 = smul.addr %s135, 2
          %s137 = smul.addr %s136, 4
          %s138 = scalar_lea.vmem %s0, %s137
        $region28: #{tpu_custom_call.1} parent=23 // pred_fallthru
          _
      $region24: #{tpu_custom_call.1} parent=5 // pred_fallthru
        _
      %p139 = scmp.le.s32.totalorder 1, %s12
      %p140 = scmp.lt.s32.totalorder %s12, 3
      %p141 = pnand %p139, %p140
      %p142 = pneg %p141
      // Predicated region
      $region29: #{tpu_custom_call.1} parent=5 // pred_check
        _
      $region30: #{tpu_custom_call.1} parent=5 // pred_check_branch
        %144 = sbr.rel (%p141) target = $region32
      $region31: #{tpu_custom_call.1} parent=5 // pred_region
        %s145 = ssub.s32 %s12, 1
        %p146 = scmp.lt.s32.totalorder %s17, 1
        %s147 = scalar_select %p146, %s17, 1
        %s148 = smul.addr %s147, 2
        %s149 = smul.addr %s148, 4
        %s150 = scalar_lea.vmem %s0, %s149
        %p151 = pneg %p38
        %p152 = pneg %p35
        %p153 = pneg %p59
        %p154 = pneg %p56
        %p155 = pneg %p80
        %p156 = pneg %p77
        %p157 = pneg %p106
        %p158 = pneg %p103
        %s159 = sand.u32 %s93, 1
        %s160 = scalar_lea.sflag [#allocation4], %s159
        %s161 = sand.u32 %s93, 1
        %s162 = smul.addr %s161, 16
        %s163 = scalar_lea.vmem [#allocation3], %s162
        %p164 = scmp.lt.s32.totalorder %s17, 1
        %s165 = scalar_select %p164, %s17, 1
        %s166 = smul.addr %s165, 2
        %s167 = smul.addr %s166, 4
        %s168 = scalar_lea.vmem %s0, %s167
        %169 = vst [vmem:[#allocation2] sm:$0xf] 0.0
        %170 = vst [vmem:[#allocation2 + $0xc] sm:$0xf] 0.0
        %v171 = vld [vmem:[%s2] sm:$0xff]
        %v172 = vlaneseq
        %v173 = vand.u32 %v172, 127
        %v174 = vadd.s32 %v173, 128
        %vm175 = vcmp.lt.s32.totalorder %v173, 0
        %v176 = vsub.s32 0, %v173
        %v177 = vsel %vm175, %v176, %v173
        %v178 = vshrl.u32 %v177, 4
        %v179 = vand.u32 %v177, 15
        %v180 = vsub.s32 0, %v179
        %v181 = vsel %vm175, %v180, %v179
        %vm182 = vcmp.lt.s32.totalorder %v174, 0
        %v183 = vsub.s32 0, %v174
        %v184 = vsel %vm182, %v183, %v174
        %v185 = vshrl.u32 %v184, 4
        %v186 = vand.u32 %v184, 15
        %v187 = vsub.s32 0, %v186
        %v188 = vsel %vm182, %v187, %v186
        %vm189 = vcmp.ne.s32.totalorder %v181, 0
        %vm190 = vcmp.ne.s32.totalorder %v188, 0
        %vm191 = vcmp.lt.s32.totalorder %v181, 0
        %vm192 = vcmp.lt.s32.totalorder %v188, 0
        %vm193 = vmand %vm191, %vm189
        %vm194 = vmand %vm192, %vm190
        %v195 = vadd.s32 %v181, 16
        %v196 = vadd.s32 %v188, 16
        %v197 = vsel %vm193, %v195, %v181
        %v198 = vsel %vm194, %v196, %v188
        %vm199 = vcmp.gt.s32.totalorder %v197, 0
        %vm200 = vcmp.gt.s32.totalorder %v198, 0
        %vm201 = vcmp.lt.s32.totalorder %v197, 15
        %vm202 = vcmp.lt.s32.totalorder %v198, 15
        %v203 = vld [vmem:[%s168] sm:$0xff]
        %204 = vst [vmem:[#allocation2 + $0x4] sm:$0xff] %v203
        %v205 = vld [vmem:[#allocation2] sm:$0xff]
        %v206 = vld [vmem:[#allocation2 + $0x8] sm:$0xf]
        %v207 = vsel %vm199, 1, 0
        %v208 = vsel %vm200, 1, 0
        %vm209 = vcmp.eq.s32.totalorder %v207, 1
        %vm210 = vcmp.eq.s32.totalorder %v208, 1
        %v213 = vcombine.high %v205, %v205
        %214 = vrot.lane.b32.xlu0 %v205, 17
        %v215 = vpop.permute.xlu0 %214
        %216 = vrot.lane.b32.xlu0 %v213, 17
        %v217 = vpop.permute.xlu0 %216
        %218 = vrot.lane.b32.xlu0 %v206, 17
        %v219 = vpop.permute.xlu0 %218
        %vm220 = vcmask 138240
        %v221 = vsel %vm220, %v215, %v217
        %v222 = vsel %vm220, %v217, %v219
        %v225 = vsel %vm209, %v221, 0.0
        %v226 = vsel %vm210, %v222, 0.0
        %v227 = vld [vmem:[%s1] sm:$0xff]
        %s228 = scalar_lea.vmem %s1, 8
        %v229 = vld [vmem:[%s228] sm:$0xff]
        %230 = vrot.lane.b32.xlu0 %v205, 16
        %v231 = vpop.permute.xlu0 %230
        %232 = vrot.lane.b32.xlu0 %v213, 16
        %v233 = vpop.permute.xlu0 %232
        %234 = vrot.lane.b32.xlu0 %v206, 16
        %v235 = vpop.permute.xlu0 %234
        %vm236 = vcmask 130048
        %v237 = vsel %vm236, %v231, %v233
        %v238 = vsel %vm236, %v233, %v235
        %vm239 = vcmask 31744
        %v241 = vsel %vm239, %v229, 0
        %vm243 = vcmask 1043456
        %v244 = vsel %vm243, %v237, 0
        %v246 = vsel %vm243, %v238, 0
        %248 = vmatprep.subr.mxu0 %v246
        %249 = vmatpush1.msra.mxu0 %v244
        %250 = vmatprep.subr.mxu0 0.0
        %251 = vmatpush1.msra.mxu0 0.0
        %252 = vmatprep.subr.mxu0 0.0
        %253 = vmatpush1.msra.mxu0 0.0
        %254 = vmatprep.subr.mxu0 0.0
        %255 = vmatpush1.msra.mxu0 0.0
        %256 = vmatprep.subr.mxu0 0.0
        %257 = vmatpush1.msra.mxu0 0.0
        %258 = vmatprep.subr.mxu0 0.0
        %259 = vmatpush1.msra.mxu0 0.0
        %260 = vmatprep.subr.mxu0 0.0
        %261 = vmatpush1.msra.mxu0 0.0
        %262 = vmatprep.subr.mxu0 0.0
        %263 = vmatpush1.msra.mxu0 0.0
        %264 = vmatprep.subr.mxu0 0.0
        %265 = vmatpush1.msra.mxu0 0.0
        %266 = vmatprep.subr.mxu0 0.0
        %267 = vmatpush1.msra.mxu0 0.0
        %268 = vmatprep.subr.mxu0 0.0
        %269 = vmatpush1.msra.mxu0 0.0
        %270 = vmatprep.subr.mxu0 0.0
        %271 = vmatpush1.msra.mxu0 0.0
        %272 = vmatprep.subr.mxu0 0.0
        %273 = vmatpush1.msra.mxu0 0.0
        %274 = vmatprep.subr.mxu0 0.0
        %275 = vmatpush1.msra.mxu0 0.0
        %276 = vmatprep.subr.mxu0 0.0
        %277 = vmatpush1.msra.mxu0 0.0
        %278 = vmatprep.subr.mxu0 0.0
        %279 = vmatpush1.msra.mxu0 0.0
        %280 = vmatprep.subr.mxu0 0.0
        %281 = vmatpush1.msra.mxu0 0.0
        %282 = vmatprep.subr.mxu0 0.0
        %283 = vmatpush1.msra.mxu0 0.0
        %284 = vmatprep.subr.mxu0 0.0
        %285 = vmatpush1.msra.mxu0 0.0
        %286 = vmatprep.subr.mxu0 0.0
        %287 = vmatpush1.msra.mxu0 0.0
        %288 = vmatprep.subr.mxu0 0.0
        %289 = vmatpush1.msra.mxu0 0.0
        %290 = vmatprep.subr.mxu0 0.0
        %291 = vmatpush1.msra.mxu0 0.0
        %292 = vmatprep.subr.mxu0 0.0
        %293 = vmatpush1.msra.mxu0 0.0
        %294 = vmatprep.subr.mxu0 0.0
        %295 = vmatpush1.msra.mxu0 0.0
        %296 = vmatprep.subr.mxu0 0.0
        %297 = vmatpush1.msra.mxu0 0.0
        %298 = vmatprep.subr.mxu0 0.0
        %299 = vmatpush1.msra.mxu0 0.0
        %300 = vmatprep.subr.mxu0 0.0
        %301 = vmatpush1.msra.mxu0 0.0
        %302 = vmatprep.subr.mxu0 0.0
        %303 = vmatpush1.msra.mxu0 0.0
        %304 = vmatprep.subr.mxu0 0.0
        %305 = vmatpush1.msra.mxu0 0.0
        %306 = vmatprep.subr.mxu0 0.0
        %307 = vmatpush1.msra.mxu0 0.0
        %308 = vmatprep.subr.mxu0 0.0
        %309 = vmatpush1.msra.mxu0 0.0
        %310 = vmatprep.subr.mxu0 0.0
        %311 = vmatpush1.msra.mxu0 0.0
        %312 = vmatprep.mubr.f32.mxu0 0.0
        %313 = vmatmul.mubr.f32.gmra.mrb[0].mxu0 %v241
        %v314 = vpop.f32.mrb[0].mxu0
        %v315 = vadd.f32 0.0, %v314
        %v316 = vpop.f32.mrb[0].mxu0
        %v317 = vadd.f32 0.0, %v316
        %318 = vdwg.mxu0
        %v320 = vsel %vm239, %v227, 0
        %v323 = vsel %vm243, %v225, 0
        %v326 = vsel %vm243, %v226, 0
        %328 = vmatprep.subr.mxu0 %v326
        %329 = vmatpush1.msra.mxu0 %v323
        %330 = vmatprep.subr.mxu0 0.0
        %331 = vmatpush1.msra.mxu0 0.0
        %332 = vmatprep.subr.mxu0 0.0
        %333 = vmatpush1.msra.mxu0 0.0
        %334 = vmatprep.subr.mxu0 0.0
        %335 = vmatpush1.msra.mxu0 0.0
        %336 = vmatprep.subr.mxu0 0.0
        %337 = vmatpush1.msra.mxu0 0.0
        %338 = vmatprep.subr.mxu0 0.0
        %339 = vmatpush1.msra.mxu0 0.0
        %340 = vmatprep.subr.mxu0 0.0
        %341 = vmatpush1.msra.mxu0 0.0
        %342 = vmatprep.subr.mxu0 0.0
        %343 = vmatpush1.msra.mxu0 0.0
        %344 = vmatprep.subr.mxu0 0.0
        %345 = vmatpush1.msra.mxu0 0.0
        %346 = vmatprep.subr.mxu0 0.0
        %347 = vmatpush1.msra.mxu0 0.0
        %348 = vmatprep.subr.mxu0 0.0
        %349 = vmatpush1.msra.mxu0 0.0
        %350 = vmatprep.subr.mxu0 0.0
        %351 = vmatpush1.msra.mxu0 0.0
        %352 = vmatprep.subr.mxu0 0.0
        %353 = vmatpush1.msra.mxu0 0.0
        %354 = vmatprep.subr.mxu0 0.0
        %355 = vmatpush1.msra.mxu0 0.0
        %356 = vmatprep.subr.mxu0 0.0
        %357 = vmatpush1.msra.mxu0 0.0
        %358 = vmatprep.subr.mxu0 0.0
        %359 = vmatpush1.msra.mxu0 0.0
        %360 = vmatprep.subr.mxu0 0.0
        %361 = vmatpush1.msra.mxu0 0.0
        %362 = vmatprep.subr.mxu0 0.0
        %363 = vmatpush1.msra.mxu0 0.0
        %364 = vmatprep.subr.mxu0 0.0
        %365 = vmatpush1.msra.mxu0 0.0
        %366 = vmatprep.subr.mxu0 0.0
        %367 = vmatpush1.msra.mxu0 0.0
        %368 = vmatprep.subr.mxu0 0.0
        %369 = vmatpush1.msra.mxu0 0.0
        %370 = vmatprep.subr.mxu0 0.0
        %371 = vmatpush1.msra.mxu0 0.0
        %372 = vmatprep.subr.mxu0 0.0
        %373 = vmatpush1.msra.mxu0 0.0
        %374 = vmatprep.subr.mxu0 0.0
        %375 = vmatpush1.msra.mxu0 0.0
        %376 = vmatprep.subr.mxu0 0.0
        %377 = vmatpush1.msra.mxu0 0.0
        %378 = vmatprep.subr.mxu0 0.0
        %379 = vmatpush1.msra.mxu0 0.0
        %380 = vmatprep.subr.mxu0 0.0
        %381 = vmatpush1.msra.mxu0 0.0
        %382 = vmatprep.subr.mxu0 0.0
        %383 = vmatpush1.msra.mxu0 0.0
        %384 = vmatprep.subr.mxu0 0.0
        %385 = vmatpush1.msra.mxu0 0.0
        %386 = vmatprep.subr.mxu0 0.0
        %387 = vmatpush1.msra.mxu0 0.0
        %388 = vmatprep.subr.mxu0 0.0
        %389 = vmatpush1.msra.mxu0 0.0
        %390 = vmatprep.subr.mxu0 0.0
        %391 = vmatpush1.msra.mxu0 0.0
        %392 = vmatprep.mubr.f32.mxu0 0.0
        %393 = vmatmul.mubr.f32.gmra.mrb[0].mxu0 %v320
        %v394 = vpop.f32.mrb[0].mxu0
        %v395 = vadd.f32 %v315, %v394
        %v396 = vpop.f32.mrb[0].mxu0
        %v397 = vadd.f32 %v317, %v396
        %398 = vdwg.mxu0
        %v399 = vld [vmem:[#allocation2] sm:$0xff]
        %v400 = vld [vmem:[#allocation2 + $0x8] sm:$0xf]
        %v401 = vsel %vm201, 1, 0
        %v402 = vsel %vm202, 1, 0
        %vm403 = vcmp.eq.s32.totalorder %v401, 1
        %vm404 = vcmp.eq.s32.totalorder %v402, 1
        %v407 = vcombine.high %v399, %v399
        %408 = vrot.lane.b32.xlu0 %v399, 15
        %v409 = vpop.permute.xlu0 %408
        %410 = vrot.lane.b32.xlu0 %v407, 15
        %v411 = vpop.permute.xlu0 %410
        %412 = vrot.lane.b32.xlu0 %v400, 15
        %v413 = vpop.permute.xlu0 %412
        %vm414 = vcmask 121856
        %v415 = vsel %vm414, %v409, %v411
        %v416 = vsel %vm414, %v411, %v413
        %v419 = vsel %vm403, %v415, 0.0
        %v420 = vsel %vm404, %v416, 0.0
        %s421 = scalar_lea.vmem %s1, 16
        %v422 = vld [vmem:[%s421] sm:$0xff]
        %v424 = vsel %vm239, %v422, 0
        %v427 = vsel %vm243, %v419, 0
        %v430 = vsel %vm243, %v420, 0
        %432 = vmatprep.subr.mxu0 %v430
        %433 = vmatpush1.msra.mxu0 %v427
        %434 = vmatprep.subr.mxu0 0.0
        %435 = vmatpush1.msra.mxu0 0.0
        %436 = vmatprep.subr.mxu0 0.0
        %437 = vmatpush1.msra.mxu0 0.0
        %438 = vmatprep.subr.mxu0 0.0
        %439 = vmatpush1.msra.mxu0 0.0
        %440 = vmatprep.subr.mxu0 0.0
        %441 = vmatpush1.msra.mxu0 0.0
        %442 = vmatprep.subr.mxu0 0.0
        %443 = vmatpush1.msra.mxu0 0.0
        %444 = vmatprep.subr.mxu0 0.0
        %445 = vmatpush1.msra.mxu0 0.0
        %446 = vmatprep.subr.mxu0 0.0
        %447 = vmatpush1.msra.mxu0 0.0
        %448 = vmatprep.subr.mxu0 0.0
        %449 = vmatpush1.msra.mxu0 0.0
        %450 = vmatprep.subr.mxu0 0.0
        %451 = vmatpush1.msra.mxu0 0.0
        %452 = vmatprep.subr.mxu0 0.0
        %453 = vmatpush1.msra.mxu0 0.0
        %454 = vmatprep.subr.mxu0 0.0
        %455 = vmatpush1.msra.mxu0 0.0
        %456 = vmatprep.subr.mxu0 0.0
        %457 = vmatpush1.msra.mxu0 0.0
        %458 = vmatprep.subr.mxu0 0.0
        %459 = vmatpush1.msra.mxu0 0.0
        %460 = vmatprep.subr.mxu0 0.0
        %461 = vmatpush1.msra.mxu0 0.0
        %462 = vmatprep.subr.mxu0 0.0
        %463 = vmatpush1.msra.mxu0 0.0
        %464 = vmatprep.subr.mxu0 0.0
        %465 = vmatpush1.msra.mxu0 0.0
        %466 = vmatprep.subr.mxu0 0.0
        %467 = vmatpush1.msra.mxu0 0.0
        %468 = vmatprep.subr.mxu0 0.0
        %469 = vmatpush1.msra.mxu0 0.0
        %470 = vmatprep.subr.mxu0 0.0
        %471 = vmatpush1.msra.mxu0 0.0
        %472 = vmatprep.subr.mxu0 0.0
        %473 = vmatpush1.msra.mxu0 0.0
        %474 = vmatprep.subr.mxu0 0.0
        %475 = vmatpush1.msra.mxu0 0.0
        %476 = vmatprep.subr.mxu0 0.0
        %477 = vmatpush1.msra.mxu0 0.0
        %478 = vmatprep.subr.mxu0 0.0
        %479 = vmatpush1.msra.mxu0 0.0
        %480 = vmatprep.subr.mxu0 0.0
        %481 = vmatpush1.msra.mxu0 0.0
        %482 = vmatprep.subr.mxu0 0.0
        %483 = vmatpush1.msra.mxu0 0.0
        %484 = vmatprep.subr.mxu0 0.0
        %485 = vmatpush1.msra.mxu0 0.0
        %486 = vmatprep.subr.mxu0 0.0
        %487 = vmatpush1.msra.mxu0 0.0
        %488 = vmatprep.subr.mxu0 0.0
        %489 = vmatpush1.msra.mxu0 0.0
        %490 = vmatprep.subr.mxu0 0.0
        %491 = vmatpush1.msra.mxu0 0.0
        %492 = vmatprep.subr.mxu0 0.0
        %493 = vmatpush1.msra.mxu0 0.0
        %494 = vmatprep.subr.mxu0 0.0
        %495 = vmatpush1.msra.mxu0 0.0
        %496 = vmatprep.mubr.f32.mxu0 0.0
        %497 = vmatmul.mubr.f32.gmra.mrb[0].mxu0 %v424
        %v498 = vpop.f32.mrb[0].mxu0
        %v499 = vadd.f32 0.0, %v498
        %v500 = vpop.f32.mrb[0].mxu0
        %v501 = vadd.f32 0.0, %v500
        %502 = vdwg.mxu0
        %v503 = vadd.f32 %v395, %v499
        %v504 = vadd.f32 %v397, %v501
        %v505 = vld [vmem:[#allocation2] sm:$0xff]
        %v506 = vld [vmem:[#allocation2 + $0x8] sm:$0xf]
        %v509 = vcombine.high %v505, %v505
        %510 = vrot.lane.b32.xlu0 %v505, 1
        %v511 = vpop.permute.xlu0 %510
        %512 = vrot.lane.b32.xlu0 %v509, 1
        %v513 = vpop.permute.xlu0 %512
        %514 = vrot.lane.b32.xlu0 %v506, 1
        %v515 = vpop.permute.xlu0 %514
        %vm516 = vcmask 7168
        %v517 = vsel %vm516, %v511, %v513
        %v518 = vsel %vm516, %v513, %v515
        %v521 = vsel %vm209, %v517, 0.0
        %v522 = vsel %vm210, %v518, 0.0
        %s523 = scalar_lea.vmem %s1, 24
        %v524 = vld [vmem:[%s523] sm:$0xff]
        %v526 = vsel %vm239, %v524, 0
        %v529 = vsel %vm243, %v521, 0
        %v532 = vsel %vm243, %v522, 0
        %534 = vmatprep.subr.mxu0 %v532
        %535 = vmatpush1.msra.mxu0 %v529
        %536 = vmatprep.subr.mxu0 0.0
        %537 = vmatpush1.msra.mxu0 0.0
        %538 = vmatprep.subr.mxu0 0.0
        %539 = vmatpush1.msra.mxu0 0.0
        %540 = vmatprep.subr.mxu0 0.0
        %541 = vmatpush1.msra.mxu0 0.0
        %542 = vmatprep.subr.mxu0 0.0
        %543 = vmatpush1.msra.mxu0 0.0
        %544 = vmatprep.subr.mxu0 0.0
        %545 = vmatpush1.msra.mxu0 0.0
        %546 = vmatprep.subr.mxu0 0.0
        %547 = vmatpush1.msra.mxu0 0.0
        %548 = vmatprep.subr.mxu0 0.0
        %549 = vmatpush1.msra.mxu0 0.0
        %550 = vmatprep.subr.mxu0 0.0
        %551 = vmatpush1.msra.mxu0 0.0
        %552 = vmatprep.subr.mxu0 0.0
        %553 = vmatpush1.msra.mxu0 0.0
        %554 = vmatprep.subr.mxu0 0.0
        %555 = vmatpush1.msra.mxu0 0.0
        %556 = vmatprep.subr.mxu0 0.0
        %557 = vmatpush1.msra.mxu0 0.0
        %558 = vmatprep.subr.mxu0 0.0
        %559 = vmatpush1.msra.mxu0 0.0
        %560 = vmatprep.subr.mxu0 0.0
        %561 = vmatpush1.msra.mxu0 0.0
        %562 = vmatprep.subr.mxu0 0.0
        %563 = vmatpush1.msra.mxu0 0.0
        %564 = vmatprep.subr.mxu0 0.0
        %565 = vmatpush1.msra.mxu0 0.0
        %566 = vmatprep.subr.mxu0 0.0
        %567 = vmatpush1.msra.mxu0 0.0
        %568 = vmatprep.subr.mxu0 0.0
        %569 = vmatpush1.msra.mxu0 0.0
        %570 = vmatprep.subr.mxu0 0.0
        %571 = vmatpush1.msra.mxu0 0.0
        %572 = vmatprep.subr.mxu0 0.0
        %573 = vmatpush1.msra.mxu0 0.0
        %574 = vmatprep.subr.mxu0 0.0
        %575 = vmatpush1.msra.mxu0 0.0
        %576 = vmatprep.subr.mxu0 0.0
        %577 = vmatpush1.msra.mxu0 0.0
        %578 = vmatprep.subr.mxu0 0.0
        %579 = vmatpush1.msra.mxu0 0.0
        %580 = vmatprep.subr.mxu0 0.0
        %581 = vmatpush1.msra.mxu0 0.0
        %582 = vmatprep.subr.mxu0 0.0
        %583 = vmatpush1.msra.mxu0 0.0
        %584 = vmatprep.subr.mxu0 0.0
        %585 = vmatpush1.msra.mxu0 0.0
        %586 = vmatprep.subr.mxu0 0.0
        %587 = vmatpush1.msra.mxu0 0.0
        %588 = vmatprep.subr.mxu0 0.0
        %589 = vmatpush1.msra.mxu0 0.0
        %590 = vmatprep.subr.mxu0 0.0
        %591 = vmatpush1.msra.mxu0 0.0
        %592 = vmatprep.subr.mxu0 0.0
        %593 = vmatpush1.msra.mxu0 0.0
        %594 = vmatprep.subr.mxu0 0.0
        %595 = vmatpush1.msra.mxu0 0.0
        %596 = vmatprep.subr.mxu0 0.0
        %597 = vmatpush1.msra.mxu0 0.0
        %598 = vmatprep.mubr.f32.mxu0 0.0
        %599 = vmatmul.mubr.f32.gmra.mrb[0].mxu0 %v526
        %v600 = vpop.f32.mrb[0].mxu0
        %v601 = vadd.f32 0.0, %v600
        %v602 = vpop.f32.mrb[0].mxu0
        %v603 = vadd.f32 0.0, %v602
        %604 = vdwg.mxu0
        %v605 = vadd.f32 %v503, %v601
        %v606 = vadd.f32 %v504, %v603
        %v607 = vld [vmem:[#allocation2 + $0x4] sm:$0xff]
        %s608 = scalar_lea.vmem %s1, 32
        %v609 = vld [vmem:[%s608] sm:$0xff]
        %v611 = vcombine.high %v607, %v607
        %v613 = vsel %vm239, %v609, 0
        %v615 = vsel %vm243, %v607, 0
        %v617 = vsel %vm243, %v611, 0
        %619 = vmatprep.subr.mxu0 %v617
        %620 = vmatpush1.msra.mxu0 %v615
        %621 = vmatprep.subr.mxu0 0.0
        %622 = vmatpush1.msra.mxu0 0.0
        %623 = vmatprep.subr.mxu0 0.0
        %624 = vmatpush1.msra.mxu0 0.0
        %625 = vmatprep.subr.mxu0 0.0
        %626 = vmatpush1.msra.mxu0 0.0
        %627 = vmatprep.subr.mxu0 0.0
        %628 = vmatpush1.msra.mxu0 0.0
        %629 = vmatprep.subr.mxu0 0.0
        %630 = vmatpush1.msra.mxu0 0.0
        %631 = vmatprep.subr.mxu0 0.0
        %632 = vmatpush1.msra.mxu0 0.0
        %633 = vmatprep.subr.mxu0 0.0
        %634 = vmatpush1.msra.mxu0 0.0
        %635 = vmatprep.subr.mxu0 0.0
        %636 = vmatpush1.msra.mxu0 0.0
        %637 = vmatprep.subr.mxu0 0.0
        %638 = vmatpush1.msra.mxu0 0.0
        %639 = vmatprep.subr.mxu0 0.0
        %640 = vmatpush1.msra.mxu0 0.0
        %641 = vmatprep.subr.mxu0 0.0
        %642 = vmatpush1.msra.mxu0 0.0
        %643 = vmatprep.subr.mxu0 0.0
        %644 = vmatpush1.msra.mxu0 0.0
        %645 = vmatprep.subr.mxu0 0.0
        %646 = vmatpush1.msra.mxu0 0.0
        %647 = vmatprep.subr.mxu0 0.0
        %648 = vmatpush1.msra.mxu0 0.0
        %649 = vmatprep.subr.mxu0 0.0
        %650 = vmatpush1.msra.mxu0 0.0
        %651 = vmatprep.subr.mxu0 0.0
        %652 = vmatpush1.msra.mxu0 0.0
        %653 = vmatprep.subr.mxu0 0.0
        %654 = vmatpush1.msra.mxu0 0.0
        %655 = vmatprep.subr.mxu0 0.0
        %656 = vmatpush1.msra.mxu0 0.0
        %657 = vmatprep.subr.mxu0 0.0
        %658 = vmatpush1.msra.mxu0 0.0
        %659 = vmatprep.subr.mxu0 0.0
        %660 = vmatpush1.msra.mxu0 0.0
        %661 = vmatprep.subr.mxu0 0.0
        %662 = vmatpush1.msra.mxu0 0.0
        %663 = vmatprep.subr.mxu0 0.0
        %664 = vmatpush1.msra.mxu0 0.0
        %665 = vmatprep.subr.mxu0 0.0
        %666 = vmatpush1.msra.mxu0 0.0
        %667 = vmatprep.subr.mxu0 0.0
        %668 = vmatpush1.msra.mxu0 0.0
        %669 = vmatprep.subr.mxu0 0.0
        %670 = vmatpush1.msra.mxu0 0.0
        %671 = vmatprep.subr.mxu0 0.0
        %672 = vmatpush1.msra.mxu0 0.0
        %673 = vmatprep.subr.mxu0 0.0
        %674 = vmatpush1.msra.mxu0 0.0
        %675 = vmatprep.subr.mxu0 0.0
        %676 = vmatpush1.msra.mxu0 0.0
        %677 = vmatprep.subr.mxu0 0.0
        %678 = vmatpush1.msra.mxu0 0.0
        %679 = vmatprep.subr.mxu0 0.0
        %680 = vmatpush1.msra.mxu0 0.0
        %681 = vmatprep.subr.mxu0 0.0
        %682 = vmatpush1.msra.mxu0 0.0
        %683 = vmatprep.mubr.f32.mxu0 0.0
        %684 = vmatmul.mubr.f32.gmra.mrb[0].mxu0 %v613
        %v685 = vpop.f32.mrb[0].mxu0
        %v686 = vadd.f32 0.0, %v685
        %v687 = vpop.f32.mrb[0].mxu0
        %v688 = vadd.f32 0.0, %v687
        %689 = vdwg.mxu0
        %v690 = vadd.f32 %v605, %v686
        %v691 = vadd.f32 %v606, %v688
        %v692 = vld [vmem:[#allocation2 + $0x4] sm:$0xff]
        %v693 = vld [vmem:[#allocation2 + $0xc] sm:$0xf]
        %v696 = vcombine.high %v692, %v692
        %697 = vrot.lane.b32.xlu0 %v692, 127
        %v698 = vpop.permute.xlu0 %697
        %699 = vrot.lane.b32.xlu0 %v696, 127
        %v700 = vpop.permute.xlu0 %699
        %701 = vrot.lane.b32.xlu0 %v693, 127
        %v702 = vpop.permute.xlu0 %701
        %vm703 = vcmask 1039360
        %v704 = vsel %vm703, %v698, %v700
        %v705 = vsel %vm703, %v700, %v702
        %v708 = vsel %vm403, %v704, 0.0
        %v709 = vsel %vm404, %v705, 0.0
        %s710 = scalar_lea.vmem %s1, 40
        %v711 = vld [vmem:[%s710] sm:$0xff]
        %v713 = vsel %vm239, %v711, 0
        %v716 = vsel %vm243, %v708, 0
        %v719 = vsel %vm243, %v709, 0
        %721 = vmatprep.subr.mxu0 %v719
        %722 = vmatpush1.msra.mxu0 %v716
        %723 = vmatprep.subr.mxu0 0.0
        %724 = vmatpush1.msra.mxu0 0.0
        %725 = vmatprep.subr.mxu0 0.0
        %726 = vmatpush1.msra.mxu0 0.0
        %727 = vmatprep.subr.mxu0 0.0
        %728 = vmatpush1.msra.mxu0 0.0
        %729 = vmatprep.subr.mxu0 0.0
        %730 = vmatpush1.msra.mxu0 0.0
        %731 = vmatprep.subr.mxu0 0.0
        %732 = vmatpush1.msra.mxu0 0.0
        %733 = vmatprep.subr.mxu0 0.0
        %734 = vmatpush1.msra.mxu0 0.0
        %735 = vmatprep.subr.mxu0 0.0
        %736 = vmatpush1.msra.mxu0 0.0
        %737 = vmatprep.subr.mxu0 0.0
        %738 = vmatpush1.msra.mxu0 0.0
        %739 = vmatprep.subr.mxu0 0.0
        %740 = vmatpush1.msra.mxu0 0.0
        %741 = vmatprep.subr.mxu0 0.0
        %742 = vmatpush1.msra.mxu0 0.0
        %743 = vmatprep.subr.mxu0 0.0
        %744 = vmatpush1.msra.mxu0 0.0
        %745 = vmatprep.subr.mxu0 0.0
        %746 = vmatpush1.msra.mxu0 0.0
        %747 = vmatprep.subr.mxu0 0.0
        %748 = vmatpush1.msra.mxu0 0.0
        %749 = vmatprep.subr.mxu0 0.0
        %750 = vmatpush1.msra.mxu0 0.0
        %751 = vmatprep.subr.mxu0 0.0
        %752 = vmatpush1.msra.mxu0 0.0
        %753 = vmatprep.subr.mxu0 0.0
        %754 = vmatpush1.msra.mxu0 0.0
        %755 = vmatprep.subr.mxu0 0.0
        %756 = vmatpush1.msra.mxu0 0.0
        %757 = vmatprep.subr.mxu0 0.0
        %758 = vmatpush1.msra.mxu0 0.0
        %759 = vmatprep.subr.mxu0 0.0
        %760 = vmatpush1.msra.mxu0 0.0
        %761 = vmatprep.subr.mxu0 0.0
        %762 = vmatpush1.msra.mxu0 0.0
        %763 = vmatprep.subr.mxu0 0.0
        %764 = vmatpush1.msra.mxu0 0.0
        %765 = vmatprep.subr.mxu0 0.0
        %766 = vmatpush1.msra.mxu0 0.0
        %767 = vmatprep.subr.mxu0 0.0
        %768 = vmatpush1.msra.mxu0 0.0
        %769 = vmatprep.subr.mxu0 0.0
        %770 = vmatpush1.msra.mxu0 0.0
        %771 = vmatprep.subr.mxu0 0.0
        %772 = vmatpush1.msra.mxu0 0.0
        %773 = vmatprep.subr.mxu0 0.0
        %774 = vmatpush1.msra.mxu0 0.0
        %775 = vmatprep.subr.mxu0 0.0
        %776 = vmatpush1.msra.mxu0 0.0
        %777 = vmatprep.subr.mxu0 0.0
        %778 = vmatpush1.msra.mxu0 0.0
        %779 = vmatprep.subr.mxu0 0.0
        %780 = vmatpush1.msra.mxu0 0.0
        %781 = vmatprep.subr.mxu0 0.0
        %782 = vmatpush1.msra.mxu0 0.0
        %783 = vmatprep.subr.mxu0 0.0
        %784 = vmatpush1.msra.mxu0 0.0
        %785 = vmatprep.mubr.f32.mxu0 0.0
        %786 = vmatmul.mubr.f32.gmra.mrb[0].mxu0 %v713
        %v787 = vpop.f32.mrb[0].mxu0
        %v788 = vadd.f32 0.0, %v787
        %v789 = vpop.f32.mrb[0].mxu0
        %v790 = vadd.f32 0.0, %v789
        %791 = vdwg.mxu0
        %v792 = vadd.f32 %v690, %v788
        %v793 = vadd.f32 %v691, %v790
        %v794 = vld [vmem:[#allocation2 + $0x4] sm:$0xff]
        %v795 = vld [vmem:[#allocation2 + $0xc] sm:$0xf]
        %v798 = vcombine.high %v794, %v794
        %799 = vrot.lane.b32.xlu0 %v794, 113
        %v800 = vpop.permute.xlu0 %799
        %801 = vrot.lane.b32.xlu0 %v798, 113
        %v802 = vpop.permute.xlu0 %801
        %803 = vrot.lane.b32.xlu0 %v795, 113
        %v804 = vpop.permute.xlu0 %803
        %vm805 = vcmask 924672
        %v806 = vsel %vm805, %v800, %v802
        %v807 = vsel %vm805, %v802, %v804
        %v810 = vsel %vm209, %v806, 0.0
        %v811 = vsel %vm210, %v807, 0.0
        %s812 = scalar_lea.vmem %s1, 48
        %v813 = vld [vmem:[%s812] sm:$0xff]
        %v815 = vsel %vm239, %v813, 0
        %v818 = vsel %vm243, %v810, 0
        %v821 = vsel %vm243, %v811, 0
        %823 = vmatprep.subr.mxu0 %v821
        %824 = vmatpush1.msra.mxu0 %v818
        %825 = vmatprep.subr.mxu0 0.0
        %826 = vmatpush1.msra.mxu0 0.0
        %827 = vmatprep.subr.mxu0 0.0
        %828 = vmatpush1.msra.mxu0 0.0
        %829 = vmatprep.subr.mxu0 0.0
        %830 = vmatpush1.msra.mxu0 0.0
        %831 = vmatprep.subr.mxu0 0.0
        %832 = vmatpush1.msra.mxu0 0.0
        %833 = vmatprep.subr.mxu0 0.0
        %834 = vmatpush1.msra.mxu0 0.0
        %835 = vmatprep.subr.mxu0 0.0
        %836 = vmatpush1.msra.mxu0 0.0
        %837 = vmatprep.subr.mxu0 0.0
        %838 = vmatpush1.msra.mxu0 0.0
        %839 = vmatprep.subr.mxu0 0.0
        %840 = vmatpush1.msra.mxu0 0.0
        %841 = vmatprep.subr.mxu0 0.0
        %842 = vmatpush1.msra.mxu0 0.0
        %843 = vmatprep.subr.mxu0 0.0
        %844 = vmatpush1.msra.mxu0 0.0
        %845 = vmatprep.subr.mxu0 0.0
        %846 = vmatpush1.msra.mxu0 0.0
        %847 = vmatprep.subr.mxu0 0.0
        %848 = vmatpush1.msra.mxu0 0.0
        %849 = vmatprep.subr.mxu0 0.0
        %850 = vmatpush1.msra.mxu0 0.0
        %851 = vmatprep.subr.mxu0 0.0
        %852 = vmatpush1.msra.mxu0 0.0
        %853 = vmatprep.subr.mxu0 0.0
        %854 = vmatpush1.msra.mxu0 0.0
        %855 = vmatprep.subr.mxu0 0.0
        %856 = vmatpush1.msra.mxu0 0.0
        %857 = vmatprep.subr.mxu0 0.0
        %858 = vmatpush1.msra.mxu0 0.0
        %859 = vmatprep.subr.mxu0 0.0
        %860 = vmatpush1.msra.mxu0 0.0
        %861 = vmatprep.subr.mxu0 0.0
        %862 = vmatpush1.msra.mxu0 0.0
        %863 = vmatprep.subr.mxu0 0.0
        %864 = vmatpush1.msra.mxu0 0.0
        %865 = vmatprep.subr.mxu0 0.0
        %866 = vmatpush1.msra.mxu0 0.0
        %867 = vmatprep.subr.mxu0 0.0
        %868 = vmatpush1.msra.mxu0 0.0
        %869 = vmatprep.subr.mxu0 0.0
        %870 = vmatpush1.msra.mxu0 0.0
        %871 = vmatprep.subr.mxu0 0.0
        %872 = vmatpush1.msra.mxu0 0.0
        %873 = vmatprep.subr.mxu0 0.0
        %874 = vmatpush1.msra.mxu0 0.0
        %875 = vmatprep.subr.mxu0 0.0
        %876 = vmatpush1.msra.mxu0 0.0
        %877 = vmatprep.subr.mxu0 0.0
        %878 = vmatpush1.msra.mxu0 0.0
        %879 = vmatprep.subr.mxu0 0.0
        %880 = vmatpush1.msra.mxu0 0.0
        %881 = vmatprep.subr.mxu0 0.0
        %882 = vmatpush1.msra.mxu0 0.0
        %883 = vmatprep.subr.mxu0 0.0
        %884 = vmatpush1.msra.mxu0 0.0
        %885 = vmatprep.subr.mxu0 0.0
        %886 = vmatpush1.msra.mxu0 0.0
        %887 = vmatprep.mubr.f32.mxu0 0.0
        %888 = vmatmul.mubr.f32.gmra.mrb[0].mxu0 %v815
        %v889 = vpop.f32.mrb[0].mxu0
        %v890 = vadd.f32 0.0, %v889
        %v891 = vpop.f32.mrb[0].mxu0
        %v892 = vadd.f32 0.0, %v891
        %893 = vdwg.mxu0
        %v894 = vadd.f32 %v792, %v890
        %v895 = vadd.f32 %v793, %v892
        %v896 = vld [vmem:[#allocation2 + $0x4] sm:$0xff]
        %v897 = vld [vmem:[#allocation2 + $0xc] sm:$0xf]
        %s898 = scalar_lea.vmem %s1, 56
        %v899 = vld [vmem:[%s898] sm:$0xff]
        %v902 = vcombine.high %v896, %v896
        %903 = vrot.lane.b32.xlu0 %v896, 112
        %v904 = vpop.permute.xlu0 %903
        %905 = vrot.lane.b32.xlu0 %v902, 112
        %v906 = vpop.permute.xlu0 %905
        %907 = vrot.lane.b32.xlu0 %v897, 112
        %v908 = vpop.permute.xlu0 %907
        %vm909 = vcmask 916480
        %v910 = vsel %vm909, %v904, %v906
        %v911 = vsel %vm909, %v906, %v908
        %v913 = vsel %vm239, %v899, 0
        %v915 = vsel %vm243, %v910, 0
        %v917 = vsel %vm243, %v911, 0
        %919 = vmatprep.subr.mxu0 %v917
        %920 = vmatpush1.msra.mxu0 %v915
        %921 = vmatprep.subr.mxu0 0.0
        %922 = vmatpush1.msra.mxu0 0.0
        %923 = vmatprep.subr.mxu0 0.0
        %924 = vmatpush1.msra.mxu0 0.0
        %925 = vmatprep.subr.mxu0 0.0
        %926 = vmatpush1.msra.mxu0 0.0
        %927 = vmatprep.subr.mxu0 0.0
        %928 = vmatpush1.msra.mxu0 0.0
        %929 = vmatprep.subr.mxu0 0.0
        %930 = vmatpush1.msra.mxu0 0.0
        %931 = vmatprep.subr.mxu0 0.0
        %932 = vmatpush1.msra.mxu0 0.0
        %933 = vmatprep.subr.mxu0 0.0
        %934 = vmatpush1.msra.mxu0 0.0
        %935 = vmatprep.subr.mxu0 0.0
        %936 = vmatpush1.msra.mxu0 0.0
        %937 = vmatprep.subr.mxu0 0.0
        %938 = vmatpush1.msra.mxu0 0.0
        %939 = vmatprep.subr.mxu0 0.0
        %940 = vmatpush1.msra.mxu0 0.0
        %941 = vmatprep.subr.mxu0 0.0
        %942 = vmatpush1.msra.mxu0 0.0
        %943 = vmatprep.subr.mxu0 0.0
        %944 = vmatpush1.msra.mxu0 0.0
        %945 = vmatprep.subr.mxu0 0.0
        %946 = vmatpush1.msra.mxu0 0.0
        %947 = vmatprep.subr.mxu0 0.0
        %948 = vmatpush1.msra.mxu0 0.0
        %949 = vmatprep.subr.mxu0 0.0
        %950 = vmatpush1.msra.mxu0 0.0
        %951 = vmatprep.subr.mxu0 0.0
        %952 = vmatpush1.msra.mxu0 0.0
        %953 = vmatprep.subr.mxu0 0.0
        %954 = vmatpush1.msra.mxu0 0.0
        %955 = vmatprep.subr.mxu0 0.0
        %956 = vmatpush1.msra.mxu0 0.0
        %957 = vmatprep.subr.mxu0 0.0
        %958 = vmatpush1.msra.mxu0 0.0
        %959 = vmatprep.subr.mxu0 0.0
        %960 = vmatpush1.msra.mxu0 0.0
        %961 = vmatprep.subr.mxu0 0.0
        %962 = vmatpush1.msra.mxu0 0.0
        %963 = vmatprep.subr.mxu0 0.0
        %964 = vmatpush1.msra.mxu0 0.0
        %965 = vmatprep.subr.mxu0 0.0
        %966 = vmatpush1.msra.mxu0 0.0
        %967 = vmatprep.subr.mxu0 0.0
        %968 = vmatpush1.msra.mxu0 0.0
        %969 = vmatprep.subr.mxu0 0.0
        %970 = vmatpush1.msra.mxu0 0.0
        %971 = vmatprep.subr.mxu0 0.0
        %972 = vmatpush1.msra.mxu0 0.0
        %973 = vmatprep.subr.mxu0 0.0
        %974 = vmatpush1.msra.mxu0 0.0
        %975 = vmatprep.subr.mxu0 0.0
        %976 = vmatpush1.msra.mxu0 0.0
        %977 = vmatprep.subr.mxu0 0.0
        %978 = vmatpush1.msra.mxu0 0.0
        %979 = vmatprep.subr.mxu0 0.0
        %980 = vmatpush1.msra.mxu0 0.0
        %981 = vmatprep.subr.mxu0 0.0
        %982 = vmatpush1.msra.mxu0 0.0
        %983 = vmatprep.mubr.f32.mxu0 0.0
        %984 = vmatmul.mubr.f32.gmra.mrb[0].mxu0 %v913
        %v985 = vpop.f32.mrb[0].mxu0
        %v986 = vadd.f32 0.0, %v985
        %v987 = vpop.f32.mrb[0].mxu0
        %v988 = vadd.f32 0.0, %v987
        %989 = vdwg.mxu0
        %v990 = vadd.f32 %v894, %v986
        %v991 = vadd.f32 %v895, %v988
        %v992 = vld [vmem:[#allocation2 + $0x4] sm:$0xff]
        %v993 = vld [vmem:[#allocation2 + $0xc] sm:$0xf]
        %v996 = vcombine.high %v992, %v992
        %997 = vrot.lane.b32.xlu0 %v992, 111
        %v998 = vpop.permute.xlu0 %997
        %999 = vrot.lane.b32.xlu0 %v996, 111
        %v1000 = vpop.permute.xlu0 %999
        %1001 = vrot.lane.b32.xlu0 %v993, 111
        %v1002 = vpop.permute.xlu0 %1001
        %vm1003 = vcmask 908288
        %v1004 = vsel %vm1003, %v998, %v1000
        %v1005 = vsel %vm1003, %v1000, %v1002
        %v1008 = vsel %vm403, %v1004, 0.0
        %v1009 = vsel %vm404, %v1005, 0.0
        %s1010 = scalar_lea.vmem %s1, 64
        %v1011 = vld [vmem:[%s1010] sm:$0xff]
        %v1013 = vsel %vm239, %v1011, 0
        %v1016 = vsel %vm243, %v1008, 0
        %v1019 = vsel %vm243, %v1009, 0
        %1021 = vmatprep.subr.mxu0 %v1019
        %1022 = vmatpush1.msra.mxu0 %v1016
        %1023 = vmatprep.subr.mxu0 0.0
        %1024 = vmatpush1.msra.mxu0 0.0
        %1025 = vmatprep.subr.mxu0 0.0
        %1026 = vmatpush1.msra.mxu0 0.0
        %1027 = vmatprep.subr.mxu0 0.0
        %1028 = vmatpush1.msra.mxu0 0.0
        %1029 = vmatprep.subr.mxu0 0.0
        %1030 = vmatpush1.msra.mxu0 0.0
        %1031 = vmatprep.subr.mxu0 0.0
        %1032 = vmatpush1.msra.mxu0 0.0
        %1033 = vmatprep.subr.mxu0 0.0
        %1034 = vmatpush1.msra.mxu0 0.0
        %1035 = vmatprep.subr.mxu0 0.0
        %1036 = vmatpush1.msra.mxu0 0.0
        %1037 = vmatprep.subr.mxu0 0.0
        %1038 = vmatpush1.msra.mxu0 0.0
        %1039 = vmatprep.subr.mxu0 0.0
        %1040 = vmatpush1.msra.mxu0 0.0
        %1041 = vmatprep.subr.mxu0 0.0
        %1042 = vmatpush1.msra.mxu0 0.0
        %1043 = vmatprep.subr.mxu0 0.0
        %1044 = vmatpush1.msra.mxu0 0.0
        %1045 = vmatprep.subr.mxu0 0.0
        %1046 = vmatpush1.msra.mxu0 0.0
        %1047 = vmatprep.subr.mxu0 0.0
        %1048 = vmatpush1.msra.mxu0 0.0
        %1049 = vmatprep.subr.mxu0 0.0
        %1050 = vmatpush1.msra.mxu0 0.0
        %1051 = vmatprep.subr.mxu0 0.0
        %1052 = vmatpush1.msra.mxu0 0.0
        %1053 = vmatprep.subr.mxu0 0.0
        %1054 = vmatpush1.msra.mxu0 0.0
        %1055 = vmatprep.subr.mxu0 0.0
        %1056 = vmatpush1.msra.mxu0 0.0
        %1057 = vmatprep.subr.mxu0 0.0
        %1058 = vmatpush1.msra.mxu0 0.0
        %1059 = vmatprep.subr.mxu0 0.0
        %1060 = vmatpush1.msra.mxu0 0.0
        %1061 = vmatprep.subr.mxu0 0.0
        %1062 = vmatpush1.msra.mxu0 0.0
        %1063 = vmatprep.subr.mxu0 0.0
        %1064 = vmatpush1.msra.mxu0 0.0
        %1065 = vmatprep.subr.mxu0 0.0
        %1066 = vmatpush1.msra.mxu0 0.0
        %1067 = vmatprep.subr.mxu0 0.0
        %1068 = vmatpush1.msra.mxu0 0.0
        %1069 = vmatprep.subr.mxu0 0.0
        %1070 = vmatpush1.msra.mxu0 0.0
        %1071 = vmatprep.subr.mxu0 0.0
        %1072 = vmatpush1.msra.mxu0 0.0
        %1073 = vmatprep.subr.mxu0 0.0
        %1074 = vmatpush1.msra.mxu0 0.0
        %1075 = vmatprep.subr.mxu0 0.0
        %1076 = vmatpush1.msra.mxu0 0.0
        %1077 = vmatprep.subr.mxu0 0.0
        %1078 = vmatpush1.msra.mxu0 0.0
        %1079 = vmatprep.subr.mxu0 0.0
        %1080 = vmatpush1.msra.mxu0 0.0
        %1081 = vmatprep.subr.mxu0 0.0
        %1082 = vmatpush1.msra.mxu0 0.0
        %1083 = vmatprep.subr.mxu0 0.0
        %1084 = vmatpush1.msra.mxu0 0.0
        %1085 = vmatprep.mubr.f32.mxu0 0.0
        %1086 = vmatmul.mubr.f32.gmra.mrb[0].mxu0 %v1013
        %v1087 = vpop.f32.mrb[0].mxu0
        %v1088 = vadd.f32 0.0, %v1087
        %v1089 = vpop.f32.mrb[0].mxu0
        %v1090 = vadd.f32 0.0, %v1089
        %1091 = vdwg.mxu0
        %v1092 = vadd.f32 %v990, %v1088
        %v1093 = vadd.f32 %v991, %v1090
        %1095 = vset.pattern.permute.xlu0 0
        %1096 = vperm.xlu0 %1095, %v171
        %v1097 = vpop.permute.xlu0 %1096
        %v1099 = vadd.f32 %v1092, %v1097
        %v1100 = vadd.f32 %v1093, %v1097
        %1101 = vst [vmem:[%s163] sm:$0xff] %v1099
        %1102 = vst [vmem:[%s163 + $0x8] sm:$0xff] %v1100
        %s1103 = sand.u32 %s93, 1
        %s1104 = scalar_lea.sflag [#allocation4], %s1103
        %s1105 = sand.u32 %s93, 1
        %s1106 = smul.addr %s1105, 16
        %s1107 = scalar_lea.vmem [#allocation3], %s1106
        // Predicated region
        $region33: #{tpu_custom_call.1} parent=31 // pred_check
          %p1108 = pneg %p103
        $region34: #{tpu_custom_call.1} parent=31 // pred_check_branch
          %1110 = sbr.rel (%p1108) target = $region36
        $region35: #{tpu_custom_call.1} parent=31 // pred_region
          %s1112 = ssub.s32 256, 256
          %1113 = vsyncadd %s1104, %s1112
          %s1114 = smul.addr %s17, 2
          %s1115 = smul.addr %s1114, 128
          %s1116 = scalar_lea.hbm %s3, %s1115
          %s1118 = sshll.u32 %s1107, 4
          %s1119 = int_to_ptr.vmem [resolvable:$true] %s1118
          %1121 = dma.vmem_to_hbm [thread:$0]  %s1119, 256, %s1116, %s1104
        $region36: #{tpu_custom_call.1} parent=31 // pred_fallthru
          _
      $region32: #{tpu_custom_call.1} parent=5 // pred_fallthru
        _
      %p1122 = scmp.le.s32.totalorder 2, %s12
      // Predicated region
      $region37: #{tpu_custom_call.1} parent=5 // pred_check
        %p1123 = pneg %p1122
      $region38: #{tpu_custom_call.1} parent=5 // pred_check_branch
        %1125 = sbr.rel (%p1123) target = $region40
      $region39: #{tpu_custom_call.1} parent=5 // pred_region
        %s1126 = ssub.s32 %s12, 2
        // Predicated region
        $region41: #{tpu_custom_call.1} parent=39 // pred_check
          %p1127 = pneg %p109
        $region42: #{tpu_custom_call.1} parent=39 // pred_check_branch
          %1129 = sbr.rel (%p1127) target = $region44
        $region43: #{tpu_custom_call.1} parent=39 // pred_region
          %s1130 = sand.u32 %s94, 1
          %s1131 = scalar_lea.sflag [#allocation4], %s1130
          %s1132 = sand.u32 %s94, 1
          %s1133 = smul.addr %s1132, 16
          %s1134 = scalar_lea.vmem [#allocation3], %s1133
          %1135 = dma.done %s1131, 256
        $region44: #{tpu_custom_call.1} parent=39 // pred_fallthru
          _
      $region40: #{tpu_custom_call.1} parent=5 // pred_fallthru
        _
    $region6: #{tpu_custom_call.1} parent=1 // loop_footer
      %s16 = sadd.s32 1, %s12
    $region7: #{tpu_custom_call.1} parent=1 // loop_footer_branch
      %11 = sbr.rel target = $region3
    $region8: #{tpu_custom_call.1} parent=1 // loop_exit
      _
    %1136 = vsyncpa [#allocation4], 1
    %s1137 = scalar_lea.sflag [#allocation4], 1
    %1138 = vsyncpa %s1137, 1

</llo_original>
